<compile_context>
chip_gen: v6e
topology: v6e:2x2x1
jax: 0.10.0
libtpu: 0.0.40
codegen_flags: <defaults>
</compile_context>

<pallas_src>
import functools
import math

import jax
import jax.numpy as jnp
from jax.experimental import pallas as pl
from jax.experimental.pallas import tpu as pltpu


def _round_up(a, b):
    return (a + b - 1) // b * b


def _tanh_dtype_for_backend():
    """bf16 EUP path exists on v6e/v7x; keep tanh f32 on older gens / non-TPU."""
    try:
        kind = jax.devices()[0].device_kind.lower()
    except Exception:
        return jnp.float32
    if "tpu" in kind and not any(v in kind for v in ("v2", "v3", "v4", "v5")):
        return jnp.bfloat16
    return jnp.float32


# --------------------------------------------------------------------------- #
# Kernel 1: instance-score scan -> critical instance (raw x row)
# --------------------------------------------------------------------------- #
def _scan_kernel(n_valid, tn, x_ref, wi_ref, bi_ref, xcrit_ref, cmax_s):
    t = pl.program_id(0)
    row_ids = jax.lax.broadcasted_iota(jnp.int32, (tn, 1), 0)
    valid = (t * tn + row_ids) < n_valid

    @pl.when(t == 0)
    def _init():
        cmax_s[...] = jnp.full(cmax_s.shape, -jnp.inf, cmax_s.dtype)
        xcrit_ref[...] = jnp.zeros(xcrit_ref.shape, xcrit_ref.dtype)

    x = x_ref[...].astype(jnp.float32)                      # bf16 stream, f32 math
    # i_classifier: c = x @ W_i + b_i on the VPU (lane reduce; no 1-col matmul)
    c = jnp.sum(x * wi_ref[...], axis=1, keepdims=True) + bi_ref[...]
    c = jnp.where(valid, c, -jnp.inf)                       # mask padded rows
    tile_max = jnp.max(c, axis=0, keepdims=True)            # (1, 1)
    hit = jnp.where(c == tile_max, row_ids, tn)             # earliest max (argmax)
    sel = jnp.min(hit, axis=0, keepdims=True)
    onehot = (row_ids == sel).astype(jnp.float32)           # (TN, 1)
    x_row = jnp.sum(onehot * x, axis=0, keepdims=True)      # (1, D)
    better = tile_max > cmax_s[...]                         # strict > keeps earliest
    cmax_s[...] = jnp.where(better, tile_max, cmax_s[...])
    xcrit_ref[...] = jnp.where(better, x_row, xcrit_ref[...])


# --------------------------------------------------------------------------- #
# Kernel 2: attention / aggregation (online softmax over the bag)
# --------------------------------------------------------------------------- #
def _attn_kernel(n_valid, tn, nt, d, qdim, tanh_dtype,
                 x_ref, wlin_ref, blin_ref, wvq_ref, bvq_ref,
                 qmax_ref, wfcc_ref, bfcc_ref,
                 logits_ref, m_s, l_s, acc_s):
    t = pl.program_id(0)
    scale = 1.0 / math.sqrt(float(qdim))
    row_ids = jax.lax.broadcasted_iota(jnp.int32, (tn, 1), 0)
    valid = (t * tn + row_ids) < n_valid

    @pl.when(t == 0)
    def _init():
        m_s[...] = jnp.full(m_s.shape, -jnp.inf, m_s.dtype)
        l_s[...] = jnp.zeros(l_s.shape, l_s.dtype)
        acc_s[...] = jnp.zeros(acc_s.shape, acc_s.dtype)

    x = x_ref[...]                                           # (TN, D) bf16
    feats = jnp.maximum(
        jnp.dot(x, wlin_ref[...], preferred_element_type=jnp.float32)
        + blin_ref[...], 0.0)                                # (TN, D) f32
    vq = (jnp.dot(feats.astype(jnp.bfloat16), wvq_ref[...],
                  preferred_element_type=jnp.float32) + bvq_ref[...])
    V = vq[:, :d]                                            # (TN, D)    f32
    Q = jnp.tanh(vq[:, d:].astype(tanh_dtype))               # (TN, 512)  bf16/f32
    # attention scores vs the single q_max row; f32 accumulation on the VPU
    s = jnp.sum(Q.astype(jnp.float32) * qmax_ref[...], axis=1, keepdims=True) * scale
    s = jnp.where(valid, s, -jnp.inf)
    # online softmax (padded rows contribute exp(-inf)=0)
    m_new = jnp.maximum(m_s[...], jnp.max(s, axis=0, keepdims=True))
    alpha = jnp.exp(m_s[...] - m_new)                        # (1, 1)
    p = jnp.exp(s - m_new)                                   # (TN, 1)
    l_s[...] = alpha * l_s[...] + jnp.sum(p, axis=0, keepdims=True)
    acc_s[...] = alpha * acc_s[...] + jnp.sum(p * V, axis=0, keepdims=True)
    m_s[...] = m_new

    @pl.when(t == nt - 1)
    def _finalize():
        denom = jnp.where(l_s[...] > 0.0, l_s[...], 1.0)     # empty-bag guard
        bagg = acc_s[...] / denom                            # B = A^T @ V, (1, D)
        logits_ref[...] = (
            jnp.dot(bagg, wfcc_ref[...], preferred_element_type=jnp.float32)
            + bfcc_ref[...])


# --------------------------------------------------------------------------- #
# Params / wrapper
# --------------------------------------------------------------------------- #
def init_dsmil_params(key, input_size=128, n_classes=2, q_dim=512):
    """PyTorch-Linear-style init; weights stored as (in_features, out_features)."""
    def linear(k, fan_in, fan_out):
        bound = 1.0 / math.sqrt(fan_in)
        kw, kb = jax.random.split(k)
        W = jax.random.uniform(kw, (fan_in, fan_out), jnp.float32, -bound, bound)
        b = jax.random.uniform(kb, (1, fan_out), jnp.float32, -bound, bound)
        return W, b

    k = jax.random.split(key, 5)
    W_i, b_i = linear(k[0], input_size, 1)                  # FCLayer.fc
    W_lin, b_lin = linear(k[1], input_size, input_size)     # BClassifier.lin
    W_q, b_q = linear(k[2], input_size, q_dim)              # BClassifier.q
    W_v, b_v = linear(k[3], input_size, input_size)         # BClassifier.v
    W_fcc, b_fcc = linear(k[4], input_size, n_classes)      # BClassifier.fcc
    return dict(W_i=W_i, b_i=b_i, W_lin=W_lin, b_lin=b_lin, W_q=W_q, b_q=b_q,
                W_v=W_v, b_v=b_v, W_fcc=W_fcc, b_fcc=b_fcc)


def dsmil_forward(x_raw, params, input_size, *, tile_scan=2048, tile_attn=1024):
    # glue: PyTorch does x[:, :input_size].unsqueeze(0); bag dim is kept implicit.
    # x is streamed as bf16 (halves both HBM sweeps); all reductions stay f32.
    x = x_raw[:, :input_size].astype(jnp.bfloat16)
    n, d = x.shape
    n_classes = params["W_fcc"].shape[1]
    q_dim = params["W_q"].shape[1]
    f32 = jnp.float32

    # bag tiling: attention tile is a multiple of 16 (bf16 sublane packing);
    # the scan tile is an integer multiple of it that divides the padded length.
    tn_attn = min(_round_up(tile_attn, 16), _round_up(n, 16))
    n_pad = _round_up(n, tn_attn)
    nt_attn = n_pad // tn_attn
    k = max(1, min(max(tile_scan, tn_attn) // tn_attn, nt_attn))
    while nt_attn % k:
        k -= 1
    tn_scan = k * tn_attn
    nt_scan = n_pad // tn_scan
    if n_pad != n:
        x = jnp.pad(x, ((0, n_pad - n), (0, 0)))

    # ---------------- kernel 1: instance-score scan -> critical raw row --------
    wi_row = params["W_i"].T.astype(f32)                         # (1, D)
    bi = params["b_i"].astype(f32)                               # (1, 1)

    scan_cost = pl.CostEstimate(
        flops=2 * n_pad * d,
        transcendentals=0,
        bytes_accessed=n_pad * d * 2 + (2 * d + 1) * 4)

    xcrit = pl.pallas_call(
        functools.partial(_scan_kernel, n, tn_scan),
        out_shape=jax.ShapeDtypeStruct((1, d), f32),
        grid_spec=pltpu.PrefetchScalarGridSpec(
            num_scalar_prefetch=0,
            grid=(nt_scan,),
            in_specs=[pl.BlockSpec((tn_scan, d), lambda t: (t, 0)),
                      pl.BlockSpec((1, d), lambda t: (0, 0)),
                      pl.BlockSpec((1, 1), lambda t: (0, 0))],
            out_specs=pl.BlockSpec((1, d), lambda t: (0, 0)),
            scratch_shapes=[pltpu.VMEM((1, 1), f32)]),           # running max of c
        compiler_params=pltpu.CompilerParams(
            dimension_semantics=("arbitrary",)),                 # sequential scan
        cost_estimate=scan_cost,
    )(x, wi_row, bi)

    # ---------------- tiny XLA glue: q_max from the critical row (full f32) ----
    fc = jax.nn.relu(xcrit @ params["W_lin"].astype(f32) + params["b_lin"].astype(f32))
    q_max = jnp.tanh(fc @ params["W_q"].astype(f32) + params["b_q"].astype(f32))  # (1, 512)

    # ---------------- kernel 2: attention / aggregation ------------------------
    w_lin = params["W_lin"].astype(jnp.bfloat16)                 # (D, D)
    b_lin = params["b_lin"].astype(f32)                          # (1, D)
    w_vq = jnp.concatenate([params["W_v"], params["W_q"]],
                           axis=1).astype(jnp.bfloat16)          # (D, D+512) fused
    b_vq = jnp.concatenate([params["b_v"], params["b_q"]], axis=1).astype(f32)
    w_fcc = params["W_fcc"].astype(f32)
    b_fcc = params["b_fcc"].astype(f32)

    tanh_dtype = _tanh_dtype_for_backend()

    attn_cost = pl.CostEstimate(
        flops=(2 * n_pad * d * d + 2 * n_pad * d * (d + q_dim)
               + 2 * n_pad * q_dim + 2 * n_pad * d + 2 * d * n_classes),
        transcendentals=n_pad * (q_dim + 2) + 1,
        bytes_accessed=(n_pad * d * 2
                        + (d * d + d * (d + q_dim)) * 2
                        + (d + (d + q_dim) + q_dim + d * n_classes + n_classes) * 4
                        + n_classes * 4))

    attn_args = (x, w_lin, b_lin, w_vq, b_vq, q_max, w_fcc, b_fcc)
    in_specs = ([pl.BlockSpec((tn_attn, d), lambda t: (t, 0))]
                + [pl.BlockSpec(a.shape, lambda t: (0, 0)) for a in attn_args[1:]])

    logits = pl.pallas_call(
        functools.partial(_attn_kernel, n, tn_attn, nt_attn, d, q_dim, tanh_dtype),
        out_shape=jax.ShapeDtypeStruct((1, n_classes), f32),
        grid_spec=pltpu.PrefetchScalarGridSpec(
            num_scalar_prefetch=0,
            grid=(nt_attn,),
            in_specs=in_specs,
            out_specs=pl.BlockSpec((1, n_classes), lambda t: (0, 0)),
            scratch_shapes=[
                pltpu.VMEM((1, 1), f32),      # online-softmax m
                pltpu.VMEM((1, 1), f32),      # online-softmax l
                pltpu.VMEM((1, d), f32),      # A^T @ V accumulator
            ]),
        compiler_params=pltpu.CompilerParams(
            dimension_semantics=("arbitrary",),          # online softmax -> serial
            vmem_limit_bytes=48 * 1024 * 1024),          # safe on v5e/v6e/v7x
        cost_estimate=attn_cost,
    )(*attn_args)

    # tiny-tensor glue matching DSMIL.forward (A, B are discarded by the module)
    y_hat = jnp.argmax(logits, axis=-1)
    y_prob = jax.nn.softmax(logits, axis=-1)
    return logits, y_hat, y_prob, None, y_hat


def dsmil_reference(x_raw, params, input_size):
    """Pure-JAX f32 reference of the PyTorch forward (for a sanity check)."""
    x = x_raw[:, :input_size].astype(jnp.float32)
    c = x @ params["W_i"] + params["b_i"]
    feats = jax.nn.relu(x @ params["W_lin"] + params["b_lin"])
    V = feats @ params["W_v"] + params["b_v"]
    Q = jnp.tanh(feats @ params["W_q"] + params["b_q"])
    top = jnp.argmax(c[:, 0])
    q_max = jnp.tanh(feats[top][None, :] @ params["W_q"] + params["b_q"])
    A = jax.nn.softmax((Q @ q_max.T) / jnp.sqrt(jnp.float32(Q.shape[1])), axis=0)
    B = A.T @ V
    return B @ params["W_fcc"] + params["b_fcc"]


if __name__ == "__main__":
    INPUT_SIZE = 128    # module default is 384; kept small but lane-aligned
    N_CLASSES = 2
    N_INSTANCES = 50    # not a multiple of the tiles -> exercises padding/masking
    RAW_DIM = 160       # raw feature dim > input_size exercises x[:, :input_size]

    key = jax.random.PRNGKey(0)
    k_params, k_x = jax.random.split(key)
    params = init_dsmil_params(k_params, INPUT_SIZE, N_CLASSES)
    x = jax.random.normal(k_x, (N_INSTANCES, RAW_DIM), jnp.float32)

    # small tiles exercise the multi-tile streaming path of both kernels
    logits, y_hat, y_prob, _, _ = dsmil_forward(
        x, params, INPUT_SIZE, tile_scan=32, tile_attn=16)
    jax.block_until_ready((logits, y_hat, y_prob))

    ref_logits = dsmil_reference(x, params, INPUT_SIZE)
    assert logits.shape == (1, N_CLASSES)
    assert y_prob.shape == (1, N_CLASSES)
    assert y_hat.shape == (1,)
    assert jnp.allclose(logits, ref_logits, atol=5e-2, rtol=5e-2), (logits, ref_logits)
    print("KERNEL_OK")
</pallas_src>

<mosaic_0001>
module attributes {stable_mosaic.version = 11 : i64} {
  func.func @_scan_kernel(%arg0: i32, %arg1: memref<32x128xbf16, #tpu.memory_space<vmem>>, %arg2: memref<1x128xf32, #tpu.memory_space<vmem>>, %arg3: memref<1x1xf32, #tpu.memory_space<vmem>>, %arg4: memref<1x128xf32, #tpu.memory_space<vmem>>, %arg5: memref<1x1xf32, #tpu.memory_space<vmem>>) attributes {dimension_semantics = [#tpu.dimension_semantics<arbitrary>], iteration_bounds = array<i64: 2>, scalar_prefetch = 0 : i64, scratch_operands = 1 : i64, tpu.core_type = #tpu.core_type<tc>, window_params = [{transform_indices = @transform_0, window_bounds = array<i64: 32, 128>}, {pipeline_mode = #tpu.pipeline_mode<synchronous>, transform_indices = @transform_1, window_bounds = array<i64: 1, 128>}, {pipeline_mode = #tpu.pipeline_mode<synchronous>, transform_indices = @transform_2, window_bounds = array<i64: 1, 1>}, {pipeline_mode = #tpu.pipeline_mode<synchronous>, transform_indices = @transform_3, window_bounds = array<i64: 1, 128>}]} {
    %0 = tpu.iota {dimensions = array<i32: 0>} : vector<32x1xi32>
    %c32_i32 = arith.constant 32 : i32
    %1 = arith.muli %arg0, %c32_i32 : i32
    %2 = vector.broadcast %1 : i32 to vector<32x1xi32>
    %3 = arith.addi %2, %0 : vector<32x1xi32>
    %c50_i32 = arith.constant 50 : i32
    %4 = vector.broadcast %c50_i32 : i32 to vector<32x1xi32>
    %5 = arith.cmpi slt, %3, %4 : vector<32x1xi32>
    %c0_i32 = arith.constant 0 : i32
    %6 = arith.cmpi eq, %arg0, %c0_i32 : i32
    %7 = arith.extui %6 : i1 to i32
    %c0_i32_0 = arith.constant 0 : i32
    %8 = arith.cmpi ne, %7, %c0_i32_0 : i32
    scf.if %8 {
      %cst_21 = arith.constant 0xFF800000 : f32
      %47 = vector.broadcast %cst_21 : f32 to vector<1x1xf32>
      %c0_22 = arith.constant 0 : index
      %c0_23 = arith.constant 0 : index
      %48 = vector.load %arg5[%c0_22, %c0_23] : memref<1x1xf32, #tpu.memory_space<vmem>>, vector<1x1xf32>
      tpu.vector_store %arg5[%c0_22, %c0_23], %47 {strides = array<i32>} : memref<1x1xf32, #tpu.memory_space<vmem>>, vector<1x1xf32>,
      %cst_24 = arith.constant 0.000000e+00 : f32
      %49 = vector.broadcast %cst_24 : f32 to vector<1x128xf32>
      %c0_25 = arith.constant 0 : index
      %c0_26 = arith.constant 0 : index
      %50 = vector.load %arg4[%c0_25, %c0_26] : memref<1x128xf32, #tpu.memory_space<vmem>>, vector<1x128xf32>
      tpu.vector_store %arg4[%c0_25, %c0_26], %49 {strides = array<i32>} : memref<1x128xf32, #tpu.memory_space<vmem>>, vector<1x128xf32>,
    } else {
    }
    %c0 = arith.constant 0 : index
    %c0_1 = arith.constant 0 : index
    %9 = vector.load %arg1[%c0, %c0_1] : memref<32x128xbf16, #tpu.memory_space<vmem>>, vector<32x128xbf16>
    %10 = arith.extf %9 : vector<32x128xbf16> to vector<32x128xf32>
    %c0_2 = arith.constant 0 : index
    %c0_3 = arith.constant 0 : index
    %11 = vector.load %arg2[%c0_2, %c0_3] : memref<1x128xf32, #tpu.memory_space<vmem>>, vector<1x128xf32>
    %12 = vector.broadcast %11 : vector<1x128xf32> to vector<32x128xf32>
    %13 = arith.mulf %10, %12 : vector<32x128xf32>
    %cst = arith.constant dense<0.000000e+00> : vector<32xf32>
    %14 = vector.multi_reduction <add>, %13, %cst [1] : vector<32x128xf32> to vector<32xf32>
    %15 = vector.shape_cast %14 : vector<32xf32> to vector<32x1xf32>
    %c0_4 = arith.constant 0 : index
    %c0_5 = arith.constant 0 : index
    %16 = vector.load %arg3[%c0_4, %c0_5] : memref<1x1xf32, #tpu.memory_space<vmem>>, vector<1x1xf32>
    %17 = vector.broadcast %16 : vector<1x1xf32> to vector<32x1xf32>
    %18 = arith.addf %15, %17 : vector<32x1xf32>
    %cst_6 = arith.constant 0xFF800000 : f32
    %19 = vector.broadcast %cst_6 : f32 to vector<32x1xf32>
    %20 = arith.select %5, %18, %19 : vector<32x1xi1>, vector<32x1xf32>
    %cst_7 = arith.constant dense<0xFF800000> : vector<1xf32>
    %21 = vector.multi_reduction <maximumf>, %20, %cst_7 [0] : vector<32x1xf32> to vector<1xf32>
    %22 = vector.shape_cast %21 : vector<1xf32> to vector<1x1xf32>
    %23 = vector.broadcast %22 : vector<1x1xf32> to vector<32x1xf32>
    %24 = arith.cmpf oeq, %20, %23 : vector<32x1xf32>
    %c32_i32_8 = arith.constant 32 : i32
    %25 = vector.broadcast %c32_i32_8 : i32 to vector<32x1xi32>
    %26 = arith.select %24, %0, %25 : vector<32x1xi1>, vector<32x1xi32>
    %cst_9 = arith.constant dense<2147483647> : vector<1xi32>
    %27 = vector.multi_reduction <minsi>, %26, %cst_9 [0] : vector<32x1xi32> to vector<1xi32>
    %28 = vector.shape_cast %27 : vector<1xi32> to vector<1x1xi32>
    %29 = vector.broadcast %28 : vector<1x1xi32> to vector<32x1xi32>
    %30 = arith.cmpi eq, %0, %29 : vector<32x1xi32>
    %31 = arith.extui %30 : vector<32x1xi1> to vector<32x1xi32>
    %32 = arith.sitofp %31 : vector<32x1xi32> to vector<32x1xf32>
    %33 = vector.broadcast %32 : vector<32x1xf32> to vector<32x128xf32>
    %34 = arith.mulf %33, %10 : vector<32x128xf32>
    %cst_10 = arith.constant dense<0.000000e+00> : vector<128xf32>
    %35 = vector.multi_reduction <add>, %34, %cst_10 [0] : vector<32x128xf32> to vector<128xf32>
    %36 = vector.shape_cast %35 : vector<128xf32> to vector<1x128xf32>
    %c0_11 = arith.constant 0 : index
    %c0_12 = arith.constant 0 : index
    %37 = vector.load %arg5[%c0_11, %c0_12] : memref<1x1xf32, #tpu.memory_space<vmem>>, vector<1x1xf32>
    %38 = arith.cmpf ogt, %22, %37 : vector<1x1xf32>
    %c0_13 = arith.constant 0 : index
    %c0_14 = arith.constant 0 : index
    %39 = vector.load %arg5[%c0_13, %c0_14] : memref<1x1xf32, #tpu.memory_space<vmem>>, vector<1x1xf32>
    %40 = arith.select %38, %22, %39 : vector<1x1xi1>, vector<1x1xf32>
    %c0_15 = arith.constant 0 : index
    %c0_16 = arith.constant 0 : index
    %41 = vector.load %arg5[%c0_15, %c0_16] : memref<1x1xf32, #tpu.memory_space<vmem>>, vector<1x1xf32>
    tpu.vector_store %arg5[%c0_15, %c0_16], %40 {strides = array<i32>} : memref<1x1xf32, #tpu.memory_space<vmem>>, vector<1x1xf32>,
    %c0_17 = arith.constant 0 : index
    %c0_18 = arith.constant 0 : index
    %42 = vector.load %arg4[%c0_17, %c0_18] : memref<1x128xf32, #tpu.memory_space<vmem>>, vector<1x128xf32>
    %43 = vector.shape_cast %38 : vector<1x1xi1> to vector<1x1xi1>
    %44 = vector.broadcast %43 : vector<1x1xi1> to vector<1x128xi1>
    %45 = arith.select %44, %36, %42 : vector<1x128xi1>, vector<1x128xf32>
    %c0_19 = arith.constant 0 : index
    %c0_20 = arith.constant 0 : index
    %46 = vector.load %arg4[%c0_19, %c0_20] : memref<1x128xf32, #tpu.memory_space<vmem>>, vector<1x128xf32>
    tpu.vector_store %arg4[%c0_19, %c0_20], %45 {strides = array<i32>} : memref<1x128xf32, #tpu.memory_space<vmem>>, vector<1x128xf32>,
    return
  }
  func.func @transform_0(%arg0: i32) -> (i32, i32) {
    %c0_i32 = arith.constant 0 : i32
    %c0_i32_0 = arith.constant 0 : i32
    return %arg0, %c0_i32 : i32, i32
  }
  func.func @transform_1(%arg0: i32) -> (i32, i32) {
    %c0_i32 = arith.constant 0 : i32
    %c0_i32_0 = arith.constant 0 : i32
    %c0_i32_1 = arith.constant 0 : i32
    return %c0_i32, %c0_i32_0 : i32, i32
  }
  func.func @transform_2(%arg0: i32) -> (i32, i32) {
    %c0_i32 = arith.constant 0 : i32
    %c0_i32_0 = arith.constant 0 : i32
    %c0_i32_1 = arith.constant 0 : i32
    return %c0_i32, %c0_i32_0 : i32, i32
  }
  func.func @transform_3(%arg0: i32) -> (i32, i32) {
    %c0_i32 = arith.constant 0 : i32
    %c0_i32_0 = arith.constant 0 : i32
    %c0_i32_1 = arith.constant 0 : i32
    return %c0_i32, %c0_i32_0 : i32, i32
  }
}

</mosaic_0001>

<llo_original>
// kernel: tpu_custom_call.1
$region0: #{tpu_custom_call.1}
  #allocation0 [shape = 'u32[]', space=smem, size = 0x4, offset = 0x4, fixed_abs, tag = 'smem constant byte address 0x4 - core index']
  #allocation1 [shape = 'u32[144,128]{1,0:T(1,128)}', space=vmem, size = 0x12000, scoped, tag = 'internal scratch']
  #allocation2 [shape = 'f32[1,1]{1,0:T(1,128)}', space=vmem, size = 0x200, scoped, tag = 'scratch operand']
  #allocation3 [shape = 'f32[1,1]{1,0:T(1,128)S(1)}', space=vmem, size = 0x200, scoped, tag = 'scoped memory for tpu_custom_call.1']
  %s0 = inlined_call_operand.hbm [shape: bf16[64,128], index: 0, kind: input, shape index: {}]
  %s1 = inlined_call_operand.vmem [shape: f32[1,128], index: 1, kind: input, shape index: {}]
  %s2 = inlined_call_operand.<no memory space> [shape: f32[1,1], index: 2, kind: input, shape index: {}]
  %s3 = inlined_call_operand.hbm [shape: f32[1,128], index: 3, kind: output, shape index: {}]
  %s4 = sld [smem:[#allocation0]]
  $region53: #{tpu_custom_call.1} parent=0
    _
  %s6 = ssub.s32 1, %s4
  %s7 = scalar_select 0, %s6, %s4
  %v8 = vstv %s2
  %9 = vst [vmem:[#allocation3] sm:$0x1] %v8
  $region1: #{tpu_custom_call.1} parent=0
    #allocation4 [shape = 'u8[16384]{0}', space=vmem, size = 0x4000, scoped, tag = 'input window, operand 0']
    #allocation5 [shape = 's32[2]{0}', space=sflag, size = 0x8, scoped, tag = 'scoped memory for tpu_custom_call.1']
    #allocation6 [shape = 's32[2]{0}', space=sflag, size = 0x8, scoped, tag = 'scoped memory for tpu_custom_call.1']
    #allocation7 [shape = 'u8[512]{0}', space=vmem, size = 0x400, scoped, tag = 'output window, operand 0, single buffered']
    %10 = vsyncpa [#allocation5], 0
    %s11 = scalar_lea.sflag [#allocation5], 1
    %12 = vsyncpa %s11, 0
    %13 = vsyncpa [#allocation6], 0
    loop: start=0, step=1, limit=4
    $region2: #{tpu_custom_call.1} parent=1 // loop_pre_header
      _
    $region3: #{tpu_custom_call.1} parent=1 // loop_header
      %s15 = sphi 0, %s19
      %p16 = scmp.ge.s32.totalorder %s15, 4
      %s25 = sphi 0, %s27
      %s28 = sphi 0, %s25
      %s29 = sphi 0, %s28
      %s45 = sphi 0, %s29
      %s49 = sphi 0, %s49
      %s51 = sphi 0, %s49
      %s52 = sphi 0, %s51
      %s66 = sphi 0, %s52
      %s70 = sphi 0, %s70
      %s72 = sphi 0, %s70
      %s73 = sphi 0, %s72
      %s87 = sphi 0, %s73
      %s91 = sphi 0, %s91
      %s93 = sphi 0, %s91
      %s94 = sphi 0, %s93
      %s108 = sphi 0, %s94
    $region4: #{tpu_custom_call.1} parent=1 // loop_header_branch
      %18 = sbr.rel (%p16) target = $region8
    $region5: #{tpu_custom_call.1} parent=1 // loop_body
      %s20 = ssub.s32 %s15, 1
      %s21 = ssub.s32 %s15, 2
      %s22 = sadd.s32 %s15, 1
      %s23 = ssub.s32 %s15, %s22
      %p24 = scmp.eq.s32.totalorder %s23, 0
      %s26 = sadd.s32 %s25, 1
      %s27 = scalar_select %p24, %s25, %s26
      %p30 = pneg %p24
      %p31 = scmp.eq.s32.totalorder %s15, 1
      %p32 = por %p30, %p31
      %p33 = scmp.ne.s32.totalorder %s25, %s28
      %p34 = scmp.eq.s32.totalorder %s15, 0
      %p35 = por %p33, %p34
      %p36 = scmp.ne.s32.totalorder %s25, %s28
      %p37 = scmp.eq.s32.totalorder %s20, 1
      %p38 = por %p36, %p37
      %p39 = scmp.ne.s32.totalorder %s28, %s29
      %p40 = scmp.eq.s32.totalorder %s20, 0
      %p41 = por %p39, %p40
      %p42 = scmp.ne.s32.totalorder %s28, %s29
      %p43 = scmp.eq.s32.totalorder %s21, 1
      %p44 = por %p42, %p43
      %p46 = scmp.ne.s32.totalorder %s29, %s45
      %p47 = scmp.eq.s32.totalorder %s21, 0
      %p48 = por %p46, %p47
      %s50 = sadd.s32 %s49, 1
      %p53 = scmp.eq.s32.totalorder %s15, 1
      %p54 = scmp.ne.s32.totalorder %s49, %s51
      %p55 = scmp.eq.s32.totalorder %s15, 0
      %p56 = por %p54, %p55
      %p57 = scmp.ne.s32.totalorder %s49, %s51
      %p58 = scmp.eq.s32.totalorder %s20, 1
      %p59 = por %p57, %p58
      %p60 = scmp.ne.s32.totalorder %s51, %s52
      %p61 = scmp.eq.s32.totalorder %s20, 0
      %p62 = por %p60, %p61
      %p63 = scmp.ne.s32.totalorder %s51, %s52
      %p64 = scmp.eq.s32.totalorder %s21, 1
      %p65 = por %p63, %p64
      %p67 = scmp.ne.s32.totalorder %s52, %s66
      %p68 = scmp.eq.s32.totalorder %s21, 0
      %p69 = por %p67, %p68
      %s71 = sadd.s32 %s70, 1
      %p74 = scmp.eq.s32.totalorder %s15, 1
      %p75 = scmp.ne.s32.totalorder %s70, %s72
      %p76 = scmp.eq.s32.totalorder %s15, 0
      %p77 = por %p75, %p76
      %p78 = scmp.ne.s32.totalorder %s70, %s72
      %p79 = scmp.eq.s32.totalorder %s20, 1
      %p80 = por %p78, %p79
      %p81 = scmp.ne.s32.totalorder %s72, %s73
      %p82 = scmp.eq.s32.totalorder %s20, 0
      %p83 = por %p81, %p82
      %p84 = scmp.ne.s32.totalorder %s72, %s73
      %p85 = scmp.eq.s32.totalorder %s21, 1
      %p86 = por %p84, %p85
      %p88 = scmp.ne.s32.totalorder %s73, %s87
      %p89 = scmp.eq.s32.totalorder %s21, 0
      %p90 = por %p88, %p89
      %s92 = sadd.s32 %s91, 1
      %p95 = scmp.eq.s32.totalorder %s15, 1
      %p96 = scmp.ne.s32.totalorder %s91, %s93
      %p97 = scmp.eq.s32.totalorder %s15, 0
      %p98 = por %p96, %p97
      %p99 = scmp.ne.s32.totalorder %s91, %s93
      %p100 = scmp.eq.s32.totalorder %s20, 1
      %p101 = por %p99, %p100
      %p102 = scmp.ne.s32.totalorder %s93, %s94
      %p103 = scmp.eq.s32.totalorder %s20, 0
      %p104 = por %p102, %p103
      %p105 = scmp.ne.s32.totalorder %s93, %s94
      %p106 = scmp.eq.s32.totalorder %s21, 1
      %p107 = por %p105, %p106
      %p109 = scmp.ne.s32.totalorder %s94, %s108
      %p110 = scmp.eq.s32.totalorder %s21, 0
      %p111 = por %p109, %p110
      %p112 = scmp.le.s32.totalorder 1, %s15
      %p113 = scmp.lt.s32.totalorder %s15, 3
      %p114 = pnand %p112, %p113
      %p115 = pneg %p114
      // Predicated region
      $region9: #{tpu_custom_call.1} parent=5 // pred_check
        _
      $region10: #{tpu_custom_call.1} parent=5 // pred_check_branch
        %117 = sbr.rel (%p114) target = $region12
      $region11: #{tpu_custom_call.1} parent=5 // pred_region
        %s118 = ssub.s32 %s15, 1
        // Predicated region
        $region13: #{tpu_custom_call.1} parent=11 // pred_check
          %p119 = pneg %p62
        $region14: #{tpu_custom_call.1} parent=11 // pred_check_branch
          %121 = sbr.rel (%p119) target = $region16
        $region15: #{tpu_custom_call.1} parent=11 // pred_region
          _
        $region16: #{tpu_custom_call.1} parent=11 // pred_fallthru
          _
        // Predicated region
        $region17: #{tpu_custom_call.1} parent=11 // pred_check
          %p122 = pneg %p83
        $region18: #{tpu_custom_call.1} parent=11 // pred_check_branch
          %124 = sbr.rel (%p122) target = $region20
        $region19: #{tpu_custom_call.1} parent=11 // pred_region
          _
        $region20: #{tpu_custom_call.1} parent=11 // pred_fallthru
          _
      $region12: #{tpu_custom_call.1} parent=5 // pred_fallthru
        _
      %p125 = scmp.lt.s32.totalorder %s15, 2
      // Predicated region
      $region21: #{tpu_custom_call.1} parent=5 // pred_check
        %p126 = pneg %p125
      $region22: #{tpu_custom_call.1} parent=5 // pred_check_branch
        %128 = sbr.rel (%p126) target = $region24
      $region23: #{tpu_custom_call.1} parent=5 // pred_region
        // Predicated region
        $region25: #{tpu_custom_call.1} parent=23 // pred_check
          %p129 = pneg %p35
        $region26: #{tpu_custom_call.1} parent=23 // pred_check_branch
          %131 = sbr.rel (%p129) target = $region28
        $region27: #{tpu_custom_call.1} parent=23 // pred_region
          %s132 = sand.u32 %s25, 1
          %s133 = scalar_lea.sflag [#allocation5], %s132
          %s134 = sand.u32 %s25, 1
          %s135 = smul.addr %s134, 16
          %s136 = scalar_lea.vmem [#allocation4], %s135
          %s137 = smul.u32 4, %s15
          %s139 = ssub.s32 256, 256
          %140 = vsyncadd %s133, %s139
          %s141 = smul.addr %s137, 64
          %s142 = scalar_lea.hbm %s0, %s141
          %s143 = sshll.u32 %s136, 4
          %s144 = int_to_ptr.vmem [resolvable:$true] %s143
          %149 = dma.hbm_to_vmem [thread:$0]  %s142, 256, %s144, %s133, 64, 64, 4
        $region28: #{tpu_custom_call.1} parent=23 // pred_fallthru
          _
      $region24: #{tpu_custom_call.1} parent=5 // pred_fallthru
        _
      %p150 = scmp.le.s32.totalorder 1, %s15
      %p151 = scmp.lt.s32.totalorder %s15, 3
      %p152 = pnand %p150, %p151
      %p153 = pneg %p152
      // Predicated region
      $region29: #{tpu_custom_call.1} parent=5 // pred_check
        _
      $region30: #{tpu_custom_call.1} parent=5 // pred_check_branch
        %155 = sbr.rel (%p152) target = $region32
      $region31: #{tpu_custom_call.1} parent=5 // pred_region
        %s156 = ssub.s32 %s15, 1
        %s157 = sand.u32 %s28, 1
        %s158 = scalar_lea.sflag [#allocation5], %s157
        %s159 = sand.u32 %s28, 1
        %s160 = smul.addr %s159, 16
        %s161 = scalar_lea.vmem [#allocation4], %s160
        // Predicated region
        $region33: #{tpu_custom_call.1} parent=31 // pred_check
          %p162 = pneg %p41
        $region34: #{tpu_custom_call.1} parent=31 // pred_check_branch
          %164 = sbr.rel (%p162) target = $region36
        $region35: #{tpu_custom_call.1} parent=31 // pred_region
          %165 = dma.done %s158, 256
        $region36: #{tpu_custom_call.1} parent=31 // pred_fallthru
          _
        %s166 = sand.u32 %s28, 1
        %s167 = scalar_lea.sflag [#allocation5], %s166
        %s168 = sand.u32 %s28, 1
        %s169 = smul.addr %s168, 16
        %s170 = scalar_lea.vmem [#allocation4], %s169
        %p171 = pneg %p41
        %p172 = pneg %p38
        %p173 = pneg %p62
        %p174 = pneg %p59
        %p175 = pneg %p83
        %p176 = pneg %p80
        %p177 = pneg %p104
        %p178 = pneg %p101
        %s179 = smul.u32 4, %s20
        %v180 = vlaneseq
        %v181 = vshrl.u32 %v180, 7
        %v182 = vadd.s32 %v181, 8
        %v183 = vadd.s32 %v181, 16
        %v184 = vadd.s32 %v181, 24
        %s185 = smul.u32 %s20, 32
        %v186 = vstv %s185
        %v187 = vadd.s32 %v186, %v181
        %v188 = vadd.s32 %v186, %v182
        %v189 = vadd.s32 %v186, %v183
        %v190 = vadd.s32 %v186, %v184
        %vm191 = vcmp.lt.s32.totalorder %v187, 50
        %vm192 = vcmp.lt.s32.totalorder %v188, 50
        %vm193 = vcmp.lt.s32.totalorder %v189, 50
        %vm194 = vcmp.lt.s32.totalorder %v190, 50
        %p195 = scmp.eq.s32.totalorder %s20, 0
        // Predicated region
        $region37: #{tpu_custom_call.1} parent=31 // pred_check
          %p196 = pneg %p195
        $region38: #{tpu_custom_call.1} parent=31 // pred_check_branch
          %198 = sbr.rel (%p196) target = $region40
        $region39: #{tpu_custom_call.1} parent=31 // pred_region
          %vm199 = vcmask 0
          %200 = vst.msk [vmem:[#allocation2] sm:$0x1] %vm199, -inf
          %201 = vst [vmem:[#allocation7] sm:$0x1] 0.0
        $region40: #{tpu_custom_call.1} parent=31 // pred_fallthru
          _
        %v202 = vld [vmem:[%s161] sm:$0xf]
        %v203 = vld [vmem:[%s161 + $0x4] sm:$0xf]
        %v204 = vld [vmem:[%s161 + $0x8] sm:$0xf]
        %v205 = vld [vmem:[%s161 + $0xc] sm:$0xf]
        %v206 = vunpack.c.l.bf16 %v202
        %v207 = vunpack.c.l.bf16 %v203
        %v208 = vunpack.c.l.bf16 %v204
        %v209 = vunpack.c.l.bf16 %v205
        %v210 = vld [vmem:[%s1] sm:$0x1]
        %v212 = vlaneseq
        %v213 = vshrl.u32 %v212, 7
        %v214 = vsub.s32 0, %v213
        %v215 = vrot.slane %v210, %v214
        %v217 = vmul.f32 %v206, %v215
        %v218 = vmul.f32 %v207, %v215
        %v219 = vmul.f32 %v208, %v215
        %v220 = vmul.f32 %v209, %v215
        %221 = vadd.xlane.f32.xlu0 %v217
        %v222 = vpop.xlane.xlu0 %221
        %223 = vadd.xlane.f32.xlu0 %v218
        %v224 = vpop.xlane.xlu0 %223
        %225 = vadd.xlane.f32.xlu0 %v219
        %v226 = vpop.xlane.xlu0 %225
        %227 = vadd.xlane.f32.xlu0 %v220
        %v228 = vpop.xlane.xlu0 %227
        %v229 = vld [vmem:[#allocation3] sm:$0x1]
        %v231 = vlaneseq
        %v232 = vshrl.u32 %v231, 7
        %v233 = vsub.s32 0, %v232
        %v234 = vrot.slane %v229, %v233
        %v236 = vadd.f32 %v222, %v234
        %v237 = vadd.f32 %v224, %v234
        %v238 = vadd.f32 %v226, %v234
        %v239 = vadd.f32 %v228, %v234
        %v240 = vsel %vm191, %v236, -inf
        %v241 = vsel %vm192, %v237, -inf
        %v242 = vsel %vm193, %v238, -inf
        %v243 = vsel %vm194, %v239, -inf
        %vm244 = vcmask 7168
        %v245 = vsel %vm244, %v240, -inf
        %v246 = vsel %vm244, %v241, -inf
        %v247 = vsel %vm244, %v242, -inf
        %v248 = vsel %vm244, %v243, -inf
        %v249 = vmax.f32 %v245, %v246
        %v250 = vmax.f32 %v247, %v248
        %v251 = vmax.f32 %v249, %v250
        %v252 = vrot.slane %v251, 4
        %v253 = vmax.f32 %v251, %v252
        %v254 = vrot.slane %v253, 2
        %v255 = vmax.f32 %v253, %v254
        %v256 = vrot.slane %v255, 1
        %v257 = vmax.f32 %v255, %v256
        %vm258 = vcmp.eq.f32.partialorder %v240, %v257
        %vm259 = vcmp.eq.f32.partialorder %v241, %v257
        %vm260 = vcmp.eq.f32.partialorder %v242, %v257
        %vm261 = vcmp.eq.f32.partialorder %v243, %v257
        %v262 = vsel %vm258, %v181, 32
        %v263 = vsel %vm259, %v182, 32
        %v264 = vsel %vm260, %v183, 32
        %v265 = vsel %vm261, %v184, 32
        %v266 = vsel %vm244, %v262, 2147483647
        %v267 = vsel %vm244, %v263, 2147483647
        %v268 = vsel %vm244, %v264, 2147483647
        %v269 = vsel %vm244, %v265, 2147483647
        %vm270 = vcmp.lt.s32.totalorder %v266, %v267
        %v271 = vsel %vm270, %v266, %v267
        %vm272 = vcmp.lt.s32.totalorder %v268, %v269
        %v273 = vsel %vm272, %v268, %v269
        %vm274 = vcmp.lt.s32.totalorder %v271, %v273
        %v275 = vsel %vm274, %v271, %v273
        %v276 = vrot.slane %v275, 4
        %vm277 = vcmp.lt.s32.totalorder %v275, %v276
        %v278 = vsel %vm277, %v275, %v276
        %v279 = vrot.slane %v278, 2
        %vm280 = vcmp.lt.s32.totalorder %v278, %v279
        %v281 = vsel %vm280, %v278, %v279
        %v282 = vrot.slane %v281, 1
        %vm283 = vcmp.lt.s32.totalorder %v281, %v282
        %v284 = vsel %vm283, %v281, %v282
        %vm285 = vcmp.eq.s32.totalorder %v181, %v284
        %vm286 = vcmp.eq.s32.totalorder %v182, %v284
        %vm287 = vcmp.eq.s32.totalorder %v183, %v284
        %vm288 = vcmp.eq.s32.totalorder %v184, %v284
        %v289 = vsel %vm285, 1, 0
        %v290 = vsel %vm286, 1, 0
        %v291 = vsel %vm287, 1, 0
        %v292 = vsel %vm288, 1, 0
        %v293 = vcvt.s32.f32 %v289
        %v294 = vcvt.s32.f32 %v290
        %v295 = vcvt.s32.f32 %v291
        %v296 = vcvt.s32.f32 %v292
        %298 = vset.pattern.permute.xlu0 0
        %299 = vperm.xlu0 %298, %v293
        %v300 = vpop.permute.xlu0 %299
        %303 = vset.pattern.permute.xlu0 0
        %304 = vperm.xlu0 %303, %v294
        %v305 = vpop.permute.xlu0 %304
        %308 = vset.pattern.permute.xlu0 0
        %309 = vperm.xlu0 %308, %v295
        %v310 = vpop.permute.xlu0 %309
        %313 = vset.pattern.permute.xlu0 0
        %314 = vperm.xlu0 %313, %v296
        %v315 = vpop.permute.xlu0 %314
        %v317 = vmul.f32 %v300, %v206
        %v318 = vmul.f32 %v305, %v207
        %v319 = vmul.f32 %v310, %v208
        %v320 = vmul.f32 %v315, %v209
        %v321 = vadd.f32 %v317, %v318
        %v322 = vadd.f32 %v321, %v319
        %v323 = vadd.f32 %v322, %v320
        %v324 = vrot.slane %v323, 4
        %v325 = vadd.f32 %v323, %v324
        %v326 = vrot.slane %v325, 2
        %v327 = vadd.f32 %v325, %v326
        %v328 = vrot.slane %v327, 1
        %v329 = vadd.f32 %v327, %v328
        %v330 = vld [vmem:[#allocation2] sm:$0x1]
        %vm331 = vcmp.gt.f32.partialorder %v257, %v330
        %v332 = vsel %vm331, %v257, %v330
        %vm333 = vcmask 0
        %334 = vst.msk [vmem:[#allocation2] sm:$0x1] %vm333, %v332
        %v335 = vld [vmem:[#allocation7] sm:$0x1]
        %v336 = vsel %vm331, 1, 0
        %337 = vset.pattern.permute.xlu0 0
        %338 = vperm.xlu0 %337, %v336
        %v339 = vpop.permute.xlu0 %338
        %vm340 = vcmp.eq.s32.totalorder %v339, 1
        %v341 = vsel %vm340, %v329, %v335
        %342 = vst [vmem:[#allocation7] sm:$0x1] %v341
        // Predicated region
        $region41: #{tpu_custom_call.1} parent=31 // pred_check
          %p343 = pneg %p101
        $region42: #{tpu_custom_call.1} parent=31 // pred_check_branch
          %345 = sbr.rel (%p343) target = $region44
        $region43: #{tpu_custom_call.1} parent=31 // pred_region
          %s347 = ssub.s32 16, 16
          %348 = vsyncadd [#allocation6], %s347
          %s350 = sshll.u32 [#allocation7], 4
          %s351 = int_to_ptr.vmem [resolvable:$true] %s350
          %353 = dma.vmem_to_hbm [thread:$0]  %s351, 16, %s3, [#allocation6]
        $region44: #{tpu_custom_call.1} parent=31 // pred_fallthru
          _
        // Predicated region
        $region45: #{tpu_custom_call.1} parent=31 // pred_check
          %p354 = pneg %p101
        $region46: #{tpu_custom_call.1} parent=31 // pred_check_branch
          %356 = sbr.rel (%p354) target = $region48
        $region47: #{tpu_custom_call.1} parent=31 // pred_region
          %357 = dma.done [#allocation6], 16
        $region48: #{tpu_custom_call.1} parent=31 // pred_fallthru
          _
      $region32: #{tpu_custom_call.1} parent=5 // pred_fallthru
        _
      %p358 = scmp.le.s32.totalorder 2, %s15
      // Predicated region
      $region49: #{tpu_custom_call.1} parent=5 // pred_check
        %p359 = pneg %p358
      $region50: #{tpu_custom_call.1} parent=5 // pred_check_branch
        %361 = sbr.rel (%p359) target = $region52
      $region51: #{tpu_custom_call.1} parent=5 // pred_region
        %s362 = ssub.s32 %s15, 2
      $region52: #{tpu_custom_call.1} parent=5 // pred_fallthru
        _
    $region6: #{tpu_custom_call.1} parent=1 // loop_footer
      %s19 = sadd.s32 1, %s15
    $region7: #{tpu_custom_call.1} parent=1 // loop_footer_branch
      %14 = sbr.rel target = $region3
    $region8: #{tpu_custom_call.1} parent=1 // loop_exit
      _
    %363 = vsyncpa [#allocation5], 1
    %s364 = scalar_lea.sflag [#allocation5], 1
    %365 = vsyncpa %s364, 1
    %366 = vsyncpa [#allocation6], 1
    %s367 = scalar_lea.sflag [#allocation6], 1
    %368 = vsyncpa %s367, 1

</llo_original>
